<compile_context>
chip_gen: v5e
topology: v5e:2x2
jax: 0.10.0
libtpu: 0.0.40
codegen_flags: <defaults>
</compile_context>

<pallas_src>
import functools

import numpy as np
import jax
import jax.numpy as jnp
from jax.experimental import pallas as pl
from jax.experimental.pallas import tpu as pltpu


def _round_up(n, m):
    return ((n + m - 1) // m) * m


def _pad_rows(x, target, axis):
    pad = target - x.shape[axis]
    if pad <= 0:
        return x
    widths = [(0, 0)] * x.ndim
    widths[axis] = (0, pad)
    return jnp.pad(x, widths)


# ----------------------------------------------------------------------------
# Pallas kernel: one decoder step for a (padded) batch of beams.
# ----------------------------------------------------------------------------
def decoder_step_kernel(tok_ref, hid_ref, enc_ref, emb_ref,
                        w_ref, u_ref, b_ref, wo_ref, bo_ref,
                        logp_ref, hid_out_ref, attn_ref):
    """One decoder step.

    tok_ref : (Bp,)        SMEM int32 token ids (pad rows carry token 0)
    hid_ref : (L, Bp, H)   previous hidden state (f32)
    enc_ref : (Bp, T, H)   encoder outputs (f32)
    emb_ref : (V, H)       embedding table (f32)
    w_ref   : (L, H, 3H)   GRU input weights  [z | r | n]  (bf16)
    u_ref   : (L, H, 3H)   GRU hidden weights [z | r | n]  (bf16)
    b_ref   : (L, 1, 3H)   GRU biases (f32)
    wo_ref  : (2H, Vp)     fused output projection (bf16, pad cols = 0)
    bo_ref  : (1, Vp)      output bias (f32, pad cols = -1e9)
    outputs : log-probs (Bp, Vp), new hidden (L, Bp, H), attention (Bp, T)
    """
    L = hid_ref.shape[0]
    B = hid_ref.shape[1]
    H = hid_ref.shape[2]

    # --- Embedding lookup: VMEM row gather driven by SMEM token ids. ---
    rows = []
    for b in range(B):
        tok = tok_ref[b]
        rows.append(emb_ref[pl.ds(tok, 1), :])                      # (1, H) f32
    x = jnp.concatenate(rows, axis=0)                               # (B, H) f32

    # --- Stacked GRU (static unroll over layers); bf16 MXU, f32 elementwise. ---
    for l in range(L):
        h_prev = hid_ref[l]                                         # (B, H) f32
        gx = jnp.dot(x.astype(jnp.bfloat16), w_ref[l],
                     preferred_element_type=jnp.float32) + b_ref[l]  # (B, 3H)
        gh = jnp.dot(h_prev.astype(jnp.bfloat16), u_ref[l],
                     preferred_element_type=jnp.float32)             # (B, 3H)
        z = jax.nn.sigmoid(gx[:, 0 * H:1 * H] + gh[:, 0 * H:1 * H])
        r = jax.nn.sigmoid(gx[:, 1 * H:2 * H] + gh[:, 1 * H:2 * H])
        n = jnp.tanh(gx[:, 2 * H:3 * H] + r * gh[:, 2 * H:3 * H])
        h_new = (1.0 - z) * n + z * h_prev
        hid_out_ref[l] = h_new
        x = h_new

    # --- Dot-product attention on the MXU (batched einsum). ---
    q = x                                                            # (B, H) f32
    enc = enc_ref[...]                                               # (B, T, H)
    scores = jnp.einsum("bqh,bth->bqt", q[:, None, :], enc,
                        preferred_element_type=jnp.float32)[:, 0, :]  # (B, T)
    m = jnp.max(scores, axis=-1, keepdims=True)
    e = jnp.exp(scores - m)
    attn = e * pl.reciprocal(jnp.sum(e, axis=-1, keepdims=True), approx=True)
    context = jnp.einsum("bqt,bth->bqh", attn[:, None, :], enc,
                         preferred_element_type=jnp.float32)[:, 0, :]  # (B, H)

    # --- Fused output projection + log-softmax (V padded to 128 lanes). ---
    qc = jnp.concatenate([q, context], axis=-1).astype(jnp.bfloat16)  # (B, 2H)
    logits = (jnp.dot(qc, wo_ref[...], preferred_element_type=jnp.float32)
              + bo_ref[...])                                          # (B, Vp)
    lm = jnp.max(logits, axis=-1, keepdims=True)
    lse = jnp.log(jnp.sum(jnp.exp(logits - lm), axis=-1, keepdims=True)) + lm
    logp_ref[...] = logits - lse
    attn_ref[...] = attn


def pallas_decoder_step(tokens, hidden, enc, emb, w_gru, u_gru, b_gru, w_out, b_out):
    L, Bp, H = hidden.shape
    T = enc.shape[1]
    Vp = w_out.shape[1]
    vmem = pl.BlockSpec(memory_space=pltpu.MemorySpace.VMEM)
    smem = pl.BlockSpec(memory_space=pltpu.MemorySpace.SMEM)
    return pl.pallas_call(
        decoder_step_kernel,
        in_specs=[smem, vmem, vmem, vmem, vmem, vmem, vmem, vmem, vmem],
        out_specs=(vmem, vmem, vmem),
        out_shape=(
            jax.ShapeDtypeStruct((Bp, Vp), jnp.float32),
            jax.ShapeDtypeStruct((L, Bp, H), jnp.float32),
            jax.ShapeDtypeStruct((Bp, T), jnp.float32),
        ),
    )(tokens, hidden, enc, emb, w_gru, u_gru, b_gru, w_out, b_out)


# ----------------------------------------------------------------------------
# Jitted device-side steps (kernel + on-device top-k / beam combine).
# ----------------------------------------------------------------------------
@functools.partial(jax.jit, static_argnames=("batch_size",))
def _first_step_device(tokens_pad, hidden_pad, enc, params, *, batch_size):
    B_pad = hidden_pad.shape[1]
    enc_pad = _pad_rows(enc, B_pad, axis=0)
    logp_pad, hid_pad, attn_pad = pallas_decoder_step(tokens_pad, hidden_pad,
                                                      enc_pad, *params)
    V = params[0].shape[0]
    return (logp_pad[:batch_size, :V],
            hid_pad[:, :batch_size, :],
            attn_pad[:batch_size])


@functools.partial(jax.jit, static_argnames=("k", "batch_size"))
def _beam_step_device(tokens_pad, hidden_pad, enc_pad, cum_ps, params, *, k, batch_size):
    logp_pad, hid_pad, _ = pallas_decoder_step(tokens_pad, hidden_pad, enc_pad, *params)
    V = params[0].shape[0]
    logp = logp_pad[:batch_size * k, :V].reshape(batch_size, k, V)
    current_ps, current_vs = jax.lax.top_k(logp, k)                  # (B, k, k)
    current_ps = current_ps + cum_ps[:, :, None]
    current_ps = current_ps.reshape(batch_size, k * k)
    current_vs = current_vs.reshape(batch_size, k * k)
    topk_current_ps, topk_status_ids = jax.lax.top_k(current_ps, k)  # (B, k)
    topk_current_vs = jnp.take_along_axis(current_vs, topk_status_ids, axis=-1)
    return (hid_pad, current_ps, current_vs,
            topk_current_ps, topk_status_ids, topk_current_vs)


# ----------------------------------------------------------------------------
# Synthetic attention decoder (provides hidden_dim / ids / validate_args /
# forward_step / beam_step as the original `decoder` argument would).
# ----------------------------------------------------------------------------
class SyntheticAttnDecoder:
    def __init__(self, vocab_size, hidden_dim, num_layers, max_length,
                 sos_id, eos_id, pad_id, key):
        self.vocab_size = vocab_size
        self.hidden_dim = hidden_dim
        self.num_layers = num_layers
        self.max_length = max_length
        self.sos_id = sos_id
        self.eos_id = eos_id
        self.pad_id = pad_id
        self.device = "tpu"

        H, V, L = hidden_dim, vocab_size, num_layers
        Vp = _round_up(V, 128)                       # lane-dense vocab padding
        self.vocab_pad = Vp
        ks = jax.random.split(key, 6)
        s = 0.1
        emb = (jax.random.normal(ks[0], (V, H)) * s).astype(jnp.float32)
        w_gru = (jax.random.normal(ks[1], (L, H, 3 * H)) * s).astype(jnp.bfloat16)
        u_gru = (jax.random.normal(ks[2], (L, H, 3 * H)) * s).astype(jnp.bfloat16)
        b_gru = (jax.random.normal(ks[3], (L, 1, 3 * H)) * s).astype(jnp.float32)
        w_out = jnp.zeros((2 * H, Vp), jnp.float32)
        w_out = w_out.at[:, :V].set(jax.random.normal(ks[4], (2 * H, V)) * s)
        b_out = jnp.full((1, Vp), -1e9, jnp.float32)     # pad logits -> exp() == 0
        b_out = b_out.at[:, :V].set(jax.random.normal(ks[5], (1, V)) * s)
        # Weights packed / padded / cast ONCE (nothing per-step on the host path).
        self.params = (emb, w_gru, u_gru, b_gru,
                       w_out.astype(jnp.bfloat16), b_out)

    def validate_args(self, input_var, encoder_outputs, teacher_forcing_ratio=0.0):
        batch_size = encoder_outputs.shape[0]
        return input_var, batch_size, self.max_length

    def forward_step(self, input_var, hidden, encoder_outputs, attn=None):
        # TODO(synk): previous attention `attn` is not consumed (location-aware
        #             attention not modeled); dot attention is recomputed each step.
        tokens = np.asarray(input_var)[:, -1].astype(np.int32).reshape(-1)
        B = tokens.shape[0]
        B_pad = _round_up(B, 8)
        tokens_pad = np.zeros((B_pad,), np.int32)
        tokens_pad[:B] = tokens
        if hidden is None:
            hidden_pad = jnp.zeros((self.num_layers, B_pad, self.hidden_dim), jnp.float32)
        else:
            hidden_pad = _pad_rows(jnp.asarray(hidden), B_pad, axis=1)
        logp, new_hidden, attn_w = _first_step_device(
            jnp.asarray(tokens_pad), hidden_pad, jnp.asarray(encoder_outputs),
            self.params, batch_size=B)
        return logp, new_hidden, attn_w

    def beam_step(self, input_var, hidden_pad, encoder_outputs_pad, cumulative_ps, k):
        """Fused device step: kernel + on-device double top-k; small host pulls."""
        batch_size = int(cumulative_ps.shape[0])
        tokens = np.asarray(input_var)[:, -1].astype(np.int32).reshape(-1)
        B_pad = int(hidden_pad.shape[1])
        tokens_pad = np.zeros((B_pad,), np.int32)
        tokens_pad[:tokens.shape[0]] = tokens
        outs = _beam_step_device(
            jnp.asarray(tokens_pad), hidden_pad, encoder_outputs_pad,
            jnp.asarray(cumulative_ps, dtype=jnp.float32), self.params,
            k=k, batch_size=batch_size)
        new_hidden_pad = outs[0]                       # stays device-resident
        host = jax.device_get(outs[1:])                # 5 tiny arrays
        return new_hidden_pad, host


# ----------------------------------------------------------------------------
# Beam-search (top-k) decoder -- faithful port of the PyTorch reference.
# ----------------------------------------------------------------------------
def _inflate(array, n_repeat, dim):
    """Equivalent of tensor.repeat along one dim (tile, not repeat_interleave)."""
    reps = [1] * array.ndim
    reps[dim] *= n_repeat
    return jnp.tile(array, reps)


class SpeechTopKDecoder:
    def __init__(self, decoder, batch_size):
        self.batch_size = batch_size
        self.hidden_dim = decoder.hidden_dim
        self.pad_id = decoder.pad_id
        self.eos_id = decoder.eos_id
        self.device = decoder.device
        self.num_layers = decoder.num_layers
        self.ongoing_beams = None
        self.cumulative_ps = None
        self.finished = [[] for _ in range(batch_size)]
        self.finished_ps = [[] for _ in range(batch_size)]
        self.validate_args = decoder.validate_args
        self.forward_step = decoder.forward_step
        self.beam_step = decoder.beam_step

    def forward(self, input_var, encoder_outputs, k=3):
        batch_size, hidden = encoder_outputs.shape[0], None
        inputs, batch_size, max_length = self.validate_args(
            input_var, encoder_outputs, teacher_forcing_ratio=0.0)

        # --- first decoder step; top-k on device, pull only (B, k). ---
        step_outputs, hidden, attn = self.forward_step(input_var, hidden, encoder_outputs)
        cum_ps_dev, beams_dev = jax.lax.top_k(step_outputs, k)
        cum_ps, beams = jax.device_get((cum_ps_dev, beams_dev))
        self.ongoing_beams = np.asarray(beams).reshape(batch_size * k, 1).astype(np.int64)
        self.cumulative_ps = np.asarray(cum_ps).reshape(batch_size * k, 1).astype(np.float32)
        input_var = self.ongoing_beams                            # (B*k, 1) host

        # Inflate encoder outputs / hidden exactly as the reference does, ONCE,
        # then pad the beam-batch axis up to a full 8-sublane group and keep the
        # padded arrays device-resident for the whole decode loop.
        # NOTE: the reference inflates hidden with tile (dim=1) while encoder rows
        #       are beam-major reordered; that mismatch is faithfully reproduced.
        encoder_dim = encoder_outputs.shape[2]
        enc_beam = _inflate(jnp.asarray(encoder_outputs), k, dim=0)
        enc_beam = enc_beam.reshape(k, batch_size, -1, encoder_dim)
        enc_beam = jnp.transpose(enc_beam, (1, 0, 2, 3))
        enc_beam = enc_beam.reshape(batch_size * k, -1, encoder_dim)
        hidden = _inflate(hidden, k, dim=1)                       # (L, B*k, H)

        bk = batch_size * k
        bk_pad = _round_up(bk, 8)
        enc_pad = _pad_rows(enc_beam, bk_pad, axis=0)             # (bk_pad, T, H)
        hidden_pad = _pad_rows(hidden, bk_pad, axis=1)            # (L, bk_pad, H)

        for di in range(max_length - 1):
            if self.is_all_finished(k):
                break

            self.cumulative_ps = np.asarray(self.cumulative_ps,
                                            dtype=np.float32).reshape(batch_size, k)
            self.ongoing_beams = np.asarray(self.ongoing_beams).reshape(batch_size, k, -1)

            hidden_pad, host_outs = self.beam_step(
                input_var, hidden_pad, enc_pad, self.cumulative_ps, k)
            (current_ps, current_vs, topk_current_ps,
             topk_status_ids, topk_current_vs) = host_outs

            prev_status_ids = topk_status_ids // k
            topk_current_vs = topk_current_vs.astype(np.int64)

            prev_status = np.zeros(self.ongoing_beams.shape, dtype=np.int64)
            for batch_idx in range(batch_size):
                for idx in range(k):
                    prev_status[batch_idx, idx] = self.ongoing_beams[
                        batch_idx, prev_status_ids[batch_idx, idx]]

            self.ongoing_beams = np.concatenate(
                [prev_status, topk_current_vs[:, :, None]], axis=2)
            self.cumulative_ps = topk_current_ps.astype(np.float32)

            if np.any(topk_current_vs == self.eos_id):
                finished_ids = np.where(topk_current_vs == self.eos_id)
                num_successors = [1] * batch_size
                for batch_idx, idx in zip(*finished_ids):
                    self.finished[batch_idx].append(self.ongoing_beams[batch_idx, idx])
                    self.finished_ps[batch_idx].append(self.cumulative_ps[batch_idx, idx])
                    if k != 1:
                        eos_cnt = self.get_successor(
                            current_ps=current_ps, current_vs=current_vs,
                            finished_ids=(batch_idx, idx),
                            num_successor=num_successors[batch_idx], eos_cnt=1, k=k)
                        num_successors[batch_idx] += eos_cnt

            input_var = self.ongoing_beams[:, :, -1].reshape(batch_size * k, 1)

        return self.get_hypothesis()

    def get_successor(self, current_ps, current_vs, finished_ids, num_successor, eos_cnt, k):
        finished_batch_idx, finished_idx = finished_ids
        n = min(k + num_successor, current_ps.shape[-1])
        successor_ids = np.argsort(-current_ps, axis=-1, kind="stable")[:, :n]
        successor_idx = successor_ids[finished_batch_idx, -1]
        successor_p = float(current_ps[finished_batch_idx, successor_idx])
        successor_v = int(current_vs[finished_batch_idx, successor_idx])
        prev_status_idx = successor_idx // k
        prev_status = self.ongoing_beams[finished_batch_idx, prev_status_idx]
        prev_status = prev_status.reshape(-1)[:-1]
        successor = np.concatenate([prev_status, np.array([successor_v], dtype=np.int64)])

        if successor_v == self.eos_id:
            self.finished[finished_batch_idx].append(successor)
            self.finished_ps[finished_batch_idx].append(successor_p)
            eos_cnt = self.get_successor(current_ps, current_vs, finished_ids,
                                         num_successor + eos_cnt, eos_cnt + 1, k)
        else:
            self.ongoing_beams[finished_batch_idx, finished_idx] = successor
            self.cumulative_ps[finished_batch_idx, finished_idx] = successor_p
        return eos_cnt

    def get_hypothesis(self):
        hypothesis = []
        for batch_idx, batch in enumerate(self.finished):
            for idx, beam in enumerate(batch):
                self.finished_ps[batch_idx][idx] = (
                    self.finished_ps[batch_idx][idx] / self.get_length_penalty(len(beam)))
        for batch_idx, batch in enumerate(self.finished):
            if len(batch) == 0:
                prob_batch = np.asarray(self.cumulative_ps[batch_idx])
                top_beam_idx = int(np.argmax(prob_batch))
                hypothesis.append(np.asarray(self.ongoing_beams[batch_idx, top_beam_idx]))
            else:
                top_beam_idx = int(np.argmax(np.asarray(self.finished_ps[batch_idx],
                                                        dtype=np.float32)))
                hypothesis.append(np.asarray(batch[top_beam_idx]))
        return self.fill_sequence(hypothesis)

    def is_all_finished(self, k):
        for done in self.finished:
            if len(done) < k:
                return False
        return True

    def fill_sequence(self, hypothesis):
        batch_size = len(hypothesis)
        max_length = max(len(y_hat) for y_hat in hypothesis)
        matched = np.full((batch_size, max_length), int(self.pad_id), dtype=np.int64)
        for batch_idx, y_hat in enumerate(hypothesis):
            matched[batch_idx, :len(y_hat)] = y_hat
        return jnp.asarray(matched, dtype=jnp.int32)

    def get_length_penalty(self, length, alpha=1.2, min_length=5):
        return ((min_length + length) / (min_length + 1)) ** alpha


# ----------------------------------------------------------------------------
if __name__ == "__main__":
    key = jax.random.PRNGKey(0)
    k_param, k_enc = jax.random.split(key)

    B = 2          # batch size
    T = 16         # encoder time steps
    H = 32         # hidden / encoder dim
    V = 64         # vocab size (padded to 128 lanes for the kernel)
    L = 2          # decoder layers
    BEAM_K = 3
    MAX_LEN = 6
    PAD_ID, SOS_ID, EOS_ID = 0, 1, 2

    decoder = SyntheticAttnDecoder(vocab_size=V, hidden_dim=H, num_layers=L,
                                   max_length=MAX_LEN, sos_id=SOS_ID,
                                   eos_id=EOS_ID, pad_id=PAD_ID, key=k_param)
    topk_decoder = SpeechTopKDecoder(decoder, batch_size=B)

    encoder_outputs = jax.random.normal(k_enc, (B, T, H), dtype=jnp.float32)
    input_var = jnp.full((B, 1), SOS_ID, dtype=jnp.int32)

    hypothesis = topk_decoder.forward(input_var, encoder_outputs, k=BEAM_K)
    jax.block_until_ready(hypothesis)
    assert hypothesis.shape[0] == B
    print("KERNEL_OK")
</pallas_src>

<mosaic_0001>
module attributes {stable_mosaic.version = 11 : i64} {
  func.func @decoder_step_kernel(%arg0: memref<8xi32, #tpu.memory_space<smem>>, %arg1: memref<2x8x32xf32, #tpu.memory_space<vmem>>, %arg2: memref<8x16x32xf32, #tpu.memory_space<vmem>>, %arg3: memref<64x32xf32, #tpu.memory_space<vmem>>, %arg4: memref<2x32x96xbf16, #tpu.memory_space<vmem>>, %arg5: memref<2x32x96xbf16, #tpu.memory_space<vmem>>, %arg6: memref<2x1x96xf32, #tpu.memory_space<vmem>>, %arg7: memref<64x128xbf16, #tpu.memory_space<vmem>>, %arg8: memref<1x128xf32, #tpu.memory_space<vmem>>, %arg9: memref<8x128xf32, #tpu.memory_space<vmem>>, %arg10: memref<2x8x32xf32, #tpu.memory_space<vmem>>, %arg11: memref<8x16xf32, #tpu.memory_space<vmem>>) attributes {dimension_semantics = [], scalar_prefetch = 0 : i64, scratch_operands = 0 : i64, tpu.core_type = #tpu.core_type<tc>} {
    %c0 = arith.constant 0 : index
    %0 = memref.load %arg0[%c0] : memref<8xi32, #tpu.memory_space<smem>>
    %1 = arith.index_cast %0 : i32 to index
    %c0_0 = arith.constant 0 : index
    %2 = vector.load %arg3[%1, %c0_0] : memref<64x32xf32, #tpu.memory_space<vmem>>, vector<1x32xf32>
    %c1 = arith.constant 1 : index
    %3 = memref.load %arg0[%c1] : memref<8xi32, #tpu.memory_space<smem>>
    %4 = arith.index_cast %3 : i32 to index
    %c0_1 = arith.constant 0 : index
    %5 = vector.load %arg3[%4, %c0_1] : memref<64x32xf32, #tpu.memory_space<vmem>>, vector<1x32xf32>
    %c2 = arith.constant 2 : index
    %6 = memref.load %arg0[%c2] : memref<8xi32, #tpu.memory_space<smem>>
    %7 = arith.index_cast %6 : i32 to index
    %c0_2 = arith.constant 0 : index
    %8 = vector.load %arg3[%7, %c0_2] : memref<64x32xf32, #tpu.memory_space<vmem>>, vector<1x32xf32>
    %c3 = arith.constant 3 : index
    %9 = memref.load %arg0[%c3] : memref<8xi32, #tpu.memory_space<smem>>
    %10 = arith.index_cast %9 : i32 to index
    %c0_3 = arith.constant 0 : index
    %11 = vector.load %arg3[%10, %c0_3] : memref<64x32xf32, #tpu.memory_space<vmem>>, vector<1x32xf32>
    %c4 = arith.constant 4 : index
    %12 = memref.load %arg0[%c4] : memref<8xi32, #tpu.memory_space<smem>>
    %13 = arith.index_cast %12 : i32 to index
    %c0_4 = arith.constant 0 : index
    %14 = vector.load %arg3[%13, %c0_4] : memref<64x32xf32, #tpu.memory_space<vmem>>, vector<1x32xf32>
    %c5 = arith.constant 5 : index
    %15 = memref.load %arg0[%c5] : memref<8xi32, #tpu.memory_space<smem>>
    %16 = arith.index_cast %15 : i32 to index
    %c0_5 = arith.constant 0 : index
    %17 = vector.load %arg3[%16, %c0_5] : memref<64x32xf32, #tpu.memory_space<vmem>>, vector<1x32xf32>
    %c6 = arith.constant 6 : index
    %18 = memref.load %arg0[%c6] : memref<8xi32, #tpu.memory_space<smem>>
    %19 = arith.index_cast %18 : i32 to index
    %c0_6 = arith.constant 0 : index
    %20 = vector.load %arg3[%19, %c0_6] : memref<64x32xf32, #tpu.memory_space<vmem>>, vector<1x32xf32>
    %c7 = arith.constant 7 : index
    %21 = memref.load %arg0[%c7] : memref<8xi32, #tpu.memory_space<smem>>
    %22 = arith.index_cast %21 : i32 to index
    %c0_7 = arith.constant 0 : index
    %23 = vector.load %arg3[%22, %c0_7] : memref<64x32xf32, #tpu.memory_space<vmem>>, vector<1x32xf32>
    %24 = tpu.concatenate %2, %5, %8, %11, %14, %17, %20, %23 in 0 : vector<1x32xf32>, vector<1x32xf32>, vector<1x32xf32>, vector<1x32xf32>, vector<1x32xf32>, vector<1x32xf32>, vector<1x32xf32>, vector<1x32xf32> -> vector<8x32xf32>
    %c0_8 = arith.constant 0 : index
    %c0_9 = arith.constant 0 : index
    %c0_10 = arith.constant 0 : index
    %25 = vector.load %arg1[%c0_8, %c0_9, %c0_10] : memref<2x8x32xf32, #tpu.memory_space<vmem>>, vector<1x8x32xf32>
    %26 = vector.shape_cast %25 : vector<1x8x32xf32> to vector<8x32xf32>
    %27 = arith.truncf %24 : vector<8x32xf32> to vector<8x32xbf16>
    %c0_11 = arith.constant 0 : index
    %c0_12 = arith.constant 0 : index
    %c0_13 = arith.constant 0 : index
    %28 = vector.load %arg4[%c0_11, %c0_12, %c0_13] : memref<2x32x96xbf16, #tpu.memory_space<vmem>>, vector<1x32x96xbf16>
    %29 = vector.shape_cast %28 : vector<1x32x96xbf16> to vector<32x96xbf16>
    %cst = arith.constant dense<0.000000e+00> : vector<8x96xf32>
    %30 = tpu.matmul %27, %29, %cst {dimension_numbers = #tpu.dot_dimension_numbers<[1], [0], [0], [1], [0, 0, 1, 1], [], []>} : vector<8x32xbf16>, vector<32x96xbf16>, vector<8x96xf32> -> vector<8x96xf32>
    %c0_14 = arith.constant 0 : index
    %c0_15 = arith.constant 0 : index
    %c0_16 = arith.constant 0 : index
    %31 = vector.load %arg6[%c0_14, %c0_15, %c0_16] : memref<2x1x96xf32, #tpu.memory_space<vmem>>, vector<1x1x96xf32>
    %32 = vector.shape_cast %31 : vector<1x1x96xf32> to vector<1x96xf32>
    %33 = vector.broadcast %32 : vector<1x96xf32> to vector<8x96xf32>
    %34 = arith.addf %30, %33 : vector<8x96xf32>
    %35 = arith.truncf %26 : vector<8x32xf32> to vector<8x32xbf16>
    %c0_17 = arith.constant 0 : index
    %c0_18 = arith.constant 0 : index
    %c0_19 = arith.constant 0 : index
    %36 = vector.load %arg5[%c0_17, %c0_18, %c0_19] : memref<2x32x96xbf16, #tpu.memory_space<vmem>>, vector<1x32x96xbf16>
    %37 = vector.shape_cast %36 : vector<1x32x96xbf16> to vector<32x96xbf16>
    %cst_20 = arith.constant dense<0.000000e+00> : vector<8x96xf32>
    %38 = tpu.matmul %35, %37, %cst_20 {dimension_numbers = #tpu.dot_dimension_numbers<[1], [0], [0], [1], [0, 0, 1, 1], [], []>} : vector<8x32xbf16>, vector<32x96xbf16>, vector<8x96xf32> -> vector<8x96xf32>
    %39 = vector.extract_strided_slice %34 {offsets = [0, 0], sizes = [8, 32], strides = [1, 1]} : vector<8x96xf32> to vector<8x32xf32>
    %40 = vector.extract_strided_slice %38 {offsets = [0, 0], sizes = [8, 32], strides = [1, 1]} : vector<8x96xf32> to vector<8x32xf32>
    %41 = arith.addf %39, %40 : vector<8x32xf32>
    %42 = arith.negf %41 : vector<8x32xf32>
    %43 = math.exp %42 : vector<8x32xf32>
    %cst_21 = arith.constant 1.000000e+00 : f32
    %44 = vector.broadcast %cst_21 : f32 to vector<8x32xf32>
    %45 = arith.addf %44, %43 : vector<8x32xf32>
    %46 = arith.divf %44, %45 : vector<8x32xf32>
    %47 = vector.extract_strided_slice %34 {offsets = [0, 32], sizes = [8, 32], strides = [1, 1]} : vector<8x96xf32> to vector<8x32xf32>
    %48 = vector.extract_strided_slice %38 {offsets = [0, 32], sizes = [8, 32], strides = [1, 1]} : vector<8x96xf32> to vector<8x32xf32>
    %49 = arith.addf %47, %48 : vector<8x32xf32>
    %50 = arith.negf %49 : vector<8x32xf32>
    %51 = math.exp %50 : vector<8x32xf32>
    %cst_22 = arith.constant 1.000000e+00 : f32
    %52 = vector.broadcast %cst_22 : f32 to vector<8x32xf32>
    %53 = arith.addf %52, %51 : vector<8x32xf32>
    %54 = arith.divf %52, %53 : vector<8x32xf32>
    %55 = vector.extract_strided_slice %34 {offsets = [0, 64], sizes = [8, 32], strides = [1, 1]} : vector<8x96xf32> to vector<8x32xf32>
    %56 = vector.extract_strided_slice %38 {offsets = [0, 64], sizes = [8, 32], strides = [1, 1]} : vector<8x96xf32> to vector<8x32xf32>
    %57 = arith.mulf %54, %56 : vector<8x32xf32>
    %58 = arith.addf %55, %57 : vector<8x32xf32>
    %59 = math.tanh %58 : vector<8x32xf32>
    %cst_23 = arith.constant 1.000000e+00 : f32
    %60 = vector.broadcast %cst_23 : f32 to vector<8x32xf32>
    %61 = arith.subf %60, %46 : vector<8x32xf32>
    %62 = arith.mulf %61, %59 : vector<8x32xf32>
    %63 = arith.mulf %46, %26 : vector<8x32xf32>
    %64 = arith.addf %62, %63 : vector<8x32xf32>
    %c0_24 = arith.constant 0 : index
    %c0_25 = arith.constant 0 : index
    %c0_26 = arith.constant 0 : index
    %65 = vector.load %arg10[%c0_24, %c0_25, %c0_26] : memref<2x8x32xf32, #tpu.memory_space<vmem>>, vector<1x8x32xf32>
    %66 = vector.shape_cast %65 : vector<1x8x32xf32> to vector<8x32xf32>
    %67 = vector.shape_cast %64 : vector<8x32xf32> to vector<1x8x32xf32>
    tpu.vector_store %arg10[%c0_24, %c0_25, %c0_26], %67 {strides = array<i32>} : memref<2x8x32xf32, #tpu.memory_space<vmem>>, vector<1x8x32xf32>,
    %c1_27 = arith.constant 1 : index
    %c0_28 = arith.constant 0 : index
    %c0_29 = arith.constant 0 : index
    %68 = vector.load %arg1[%c1_27, %c0_28, %c0_29] : memref<2x8x32xf32, #tpu.memory_space<vmem>>, vector<1x8x32xf32>
    %69 = vector.shape_cast %68 : vector<1x8x32xf32> to vector<8x32xf32>
    %70 = arith.truncf %64 : vector<8x32xf32> to vector<8x32xbf16>
    %c1_30 = arith.constant 1 : index
    %c0_31 = arith.constant 0 : index
    %c0_32 = arith.constant 0 : index
    %71 = vector.load %arg4[%c1_30, %c0_31, %c0_32] : memref<2x32x96xbf16, #tpu.memory_space<vmem>>, vector<1x32x96xbf16>
    %72 = vector.shape_cast %71 : vector<1x32x96xbf16> to vector<32x96xbf16>
    %cst_33 = arith.constant dense<0.000000e+00> : vector<8x96xf32>
    %73 = tpu.matmul %70, %72, %cst_33 {dimension_numbers = #tpu.dot_dimension_numbers<[1], [0], [0], [1], [0, 0, 1, 1], [], []>} : vector<8x32xbf16>, vector<32x96xbf16>, vector<8x96xf32> -> vector<8x96xf32>
    %c1_34 = arith.constant 1 : index
    %c0_35 = arith.constant 0 : index
    %c0_36 = arith.constant 0 : index
    %74 = vector.load %arg6[%c1_34, %c0_35, %c0_36] : memref<2x1x96xf32, #tpu.memory_space<vmem>>, vector<1x1x96xf32>
    %75 = vector.shape_cast %74 : vector<1x1x96xf32> to vector<1x96xf32>
    %76 = vector.broadcast %75 : vector<1x96xf32> to vector<8x96xf32>
    %77 = arith.addf %73, %76 : vector<8x96xf32>
    %78 = arith.truncf %69 : vector<8x32xf32> to vector<8x32xbf16>
    %c1_37 = arith.constant 1 : index
    %c0_38 = arith.constant 0 : index
    %c0_39 = arith.constant 0 : index
    %79 = vector.load %arg5[%c1_37, %c0_38, %c0_39] : memref<2x32x96xbf16, #tpu.memory_space<vmem>>, vector<1x32x96xbf16>
    %80 = vector.shape_cast %79 : vector<1x32x96xbf16> to vector<32x96xbf16>
    %cst_40 = arith.constant dense<0.000000e+00> : vector<8x96xf32>
    %81 = tpu.matmul %78, %80, %cst_40 {dimension_numbers = #tpu.dot_dimension_numbers<[1], [0], [0], [1], [0, 0, 1, 1], [], []>} : vector<8x32xbf16>, vector<32x96xbf16>, vector<8x96xf32> -> vector<8x96xf32>
    %82 = vector.extract_strided_slice %77 {offsets = [0, 0], sizes = [8, 32], strides = [1, 1]} : vector<8x96xf32> to vector<8x32xf32>
    %83 = vector.extract_strided_slice %81 {offsets = [0, 0], sizes = [8, 32], strides = [1, 1]} : vector<8x96xf32> to vector<8x32xf32>
    %84 = arith.addf %82, %83 : vector<8x32xf32>
    %85 = arith.negf %84 : vector<8x32xf32>
    %86 = math.exp %85 : vector<8x32xf32>
    %cst_41 = arith.constant 1.000000e+00 : f32
    %87 = vector.broadcast %cst_41 : f32 to vector<8x32xf32>
    %88 = arith.addf %87, %86 : vector<8x32xf32>
    %89 = arith.divf %87, %88 : vector<8x32xf32>
    %90 = vector.extract_strided_slice %77 {offsets = [0, 32], sizes = [8, 32], strides = [1, 1]} : vector<8x96xf32> to vector<8x32xf32>
    %91 = vector.extract_strided_slice %81 {offsets = [0, 32], sizes = [8, 32], strides = [1, 1]} : vector<8x96xf32> to vector<8x32xf32>
    %92 = arith.addf %90, %91 : vector<8x32xf32>
    %93 = arith.negf %92 : vector<8x32xf32>
    %94 = math.exp %93 : vector<8x32xf32>
    %cst_42 = arith.constant 1.000000e+00 : f32
    %95 = vector.broadcast %cst_42 : f32 to vector<8x32xf32>
    %96 = arith.addf %95, %94 : vector<8x32xf32>
    %97 = arith.divf %95, %96 : vector<8x32xf32>
    %98 = vector.extract_strided_slice %77 {offsets = [0, 64], sizes = [8, 32], strides = [1, 1]} : vector<8x96xf32> to vector<8x32xf32>
    %99 = vector.extract_strided_slice %81 {offsets = [0, 64], sizes = [8, 32], strides = [1, 1]} : vector<8x96xf32> to vector<8x32xf32>
    %100 = arith.mulf %97, %99 : vector<8x32xf32>
    %101 = arith.addf %98, %100 : vector<8x32xf32>
    %102 = math.tanh %101 : vector<8x32xf32>
    %cst_43 = arith.constant 1.000000e+00 : f32
    %103 = vector.broadcast %cst_43 : f32 to vector<8x32xf32>
    %104 = arith.subf %103, %89 : vector<8x32xf32>
    %105 = arith.mulf %104, %102 : vector<8x32xf32>
    %106 = arith.mulf %89, %69 : vector<8x32xf32>
    %107 = arith.addf %105, %106 : vector<8x32xf32>
    %c1_44 = arith.constant 1 : index
    %c0_45 = arith.constant 0 : index
    %c0_46 = arith.constant 0 : index
    %108 = vector.load %arg10[%c1_44, %c0_45, %c0_46] : memref<2x8x32xf32, #tpu.memory_space<vmem>>, vector<1x8x32xf32>
    %109 = vector.shape_cast %108 : vector<1x8x32xf32> to vector<8x32xf32>
    %110 = vector.shape_cast %107 : vector<8x32xf32> to vector<1x8x32xf32>
    tpu.vector_store %arg10[%c1_44, %c0_45, %c0_46], %110 {strides = array<i32>} : memref<2x8x32xf32, #tpu.memory_space<vmem>>, vector<1x8x32xf32>,
    %c0_47 = arith.constant 0 : index
    %c0_48 = arith.constant 0 : index
    %c0_49 = arith.constant 0 : index
    %111 = vector.load %arg2[%c0_47, %c0_48, %c0_49] : memref<8x16x32xf32, #tpu.memory_space<vmem>>, vector<8x16x32xf32>
    %112 = vector.shape_cast %107 : vector<8x32xf32> to vector<8x1x32xf32>
    "tpu.trace_start"() <{level = 10 : i32, message = "bqh,bth->bqt"}> : () -> ()
    %cst_50 = arith.constant dense<0.000000e+00> : vector<8x1x16xf32>
    %113 = tpu.matmul %112, %111, %cst_50 {dimension_numbers = #tpu.dot_dimension_numbers<[2], [2], [1], [1], [0, 0, 0, 1, 1, 1], [0], [0]>} : vector<8x1x32xf32>, vector<8x16x32xf32>, vector<8x1x16xf32> -> vector<8x1x16xf32>
    "tpu.trace_stop"() : () -> ()
    %114 = vector.shape_cast %113 : vector<8x1x16xf32> to vector<8x16xf32>
    %cst_51 = arith.constant dense<0xFF800000> : vector<8xf32>
    %115 = vector.multi_reduction <maximumf>, %114, %cst_51 [1] : vector<8x16xf32> to vector<8xf32>
    %116 = vector.shape_cast %115 : vector<8xf32> to vector<8x1xf32>
    %117 = vector.broadcast %116 : vector<8x1xf32> to vector<8x16xf32>
    %118 = arith.subf %114, %117 : vector<8x16xf32>
    %119 = math.exp %118 : vector<8x16xf32>
    %cst_52 = arith.constant dense<0.000000e+00> : vector<8xf32>
    %120 = vector.multi_reduction <add>, %119, %cst_52 [1] : vector<8x16xf32> to vector<8xf32>
    %121 = vector.shape_cast %120 : vector<8xf32> to vector<8x1xf32>
    %122 = tpu.reciprocal %121 {approx = true} : vector<8x1xf32> -> vector<8x1xf32>
    %123 = vector.broadcast %122 : vector<8x1xf32> to vector<8x16xf32>
    %124 = arith.mulf %119, %123 : vector<8x16xf32>
    %125 = vector.shape_cast %124 : vector<8x16xf32> to vector<8x1x16xf32>
    "tpu.trace_start"() <{level = 10 : i32, message = "bqt,bth->bqh"}> : () -> ()
    %cst_53 = arith.constant dense<0.000000e+00> : vector<8x1x32xf32>
    %126 = tpu.matmul %125, %111, %cst_53 {dimension_numbers = #tpu.dot_dimension_numbers<[2], [1], [1], [2], [0, 0, 0, 1, 1, 2], [0], [0]>} : vector<8x1x16xf32>, vector<8x16x32xf32>, vector<8x1x32xf32> -> vector<8x1x32xf32>
    "tpu.trace_stop"() : () -> ()
    %127 = vector.shape_cast %126 : vector<8x1x32xf32> to vector<8x32xf32>
    %128 = tpu.concatenate %107, %127 in 1 : vector<8x32xf32>, vector<8x32xf32> -> vector<8x64xf32>
    %129 = arith.truncf %128 : vector<8x64xf32> to vector<8x64xbf16>
    %c0_54 = arith.constant 0 : index
    %c0_55 = arith.constant 0 : index
    %130 = vector.load %arg7[%c0_54, %c0_55] : memref<64x128xbf16, #tpu.memory_space<vmem>>, vector<64x128xbf16>
    %cst_56 = arith.constant dense<0.000000e+00> : vector<8x128xf32>
    %131 = tpu.matmul %129, %130, %cst_56 {dimension_numbers = #tpu.dot_dimension_numbers<[1], [0], [0], [1], [0, 0, 1, 1], [], []>} : vector<8x64xbf16>, vector<64x128xbf16>, vector<8x128xf32> -> vector<8x128xf32>
    %c0_57 = arith.constant 0 : index
    %c0_58 = arith.constant 0 : index
    %132 = vector.load %arg8[%c0_57, %c0_58] : memref<1x128xf32, #tpu.memory_space<vmem>>, vector<1x128xf32>
    %133 = vector.broadcast %132 : vector<1x128xf32> to vector<8x128xf32>
    %134 = arith.addf %131, %133 : vector<8x128xf32>
    %cst_59 = arith.constant dense<0xFF800000> : vector<8xf32>
    %135 = vector.multi_reduction <maximumf>, %134, %cst_59 [1] : vector<8x128xf32> to vector<8xf32>
    %136 = vector.shape_cast %135 : vector<8xf32> to vector<8x1xf32>
    %137 = vector.broadcast %136 : vector<8x1xf32> to vector<8x128xf32>
    %138 = arith.subf %134, %137 : vector<8x128xf32>
    %139 = math.exp %138 : vector<8x128xf32>
    %cst_60 = arith.constant dense<0.000000e+00> : vector<8xf32>
    %140 = vector.multi_reduction <add>, %139, %cst_60 [1] : vector<8x128xf32> to vector<8xf32>
    %141 = vector.shape_cast %140 : vector<8xf32> to vector<8x1xf32>
    %142 = math.log %141 : vector<8x1xf32>
    %143 = arith.addf %142, %136 : vector<8x1xf32>
    %144 = vector.broadcast %143 : vector<8x1xf32> to vector<8x128xf32>
    %145 = arith.subf %134, %144 : vector<8x128xf32>
    %c0_61 = arith.constant 0 : index
    %c0_62 = arith.constant 0 : index
    %146 = vector.load %arg9[%c0_61, %c0_62] : memref<8x128xf32, #tpu.memory_space<vmem>>, vector<8x128xf32>
    tpu.vector_store %arg9[%c0_61, %c0_62], %145 {strides = array<i32>} : memref<8x128xf32, #tpu.memory_space<vmem>>, vector<8x128xf32>,
    %c0_63 = arith.constant 0 : index
    %c0_64 = arith.constant 0 : index
    %147 = vector.load %arg11[%c0_63, %c0_64] : memref<8x16xf32, #tpu.memory_space<vmem>>, vector<8x16xf32>
    tpu.vector_store %arg11[%c0_63, %c0_64], %124 {strides = array<i32>} : memref<8x16xf32, #tpu.memory_space<vmem>>, vector<8x16xf32>,
    return
  }
}

</mosaic_0001>

<llo_original>
// kernel: _first_step_device.1
$region0: #{_first_step_device.1}
  #allocation0 [shape = 'u32[]', space=smem, size = 0x4, offset = 0x4, fixed_abs, tag = 'smem constant byte address 0x4 - core index']
  #allocation1 [shape = 'u32[72,128]{1,0:T(1,128)}', space=vmem, size = 0x9000, scoped, tag = 'internal scratch']
  %s0 = inlined_call_operand.vmem [shape: s32[8], index: 0, kind: input, shape index: {}]
  %s1 = inlined_call_operand.vmem [shape: f32[2,8,32], index: 1, kind: input, shape index: {}]
  %s2 = inlined_call_operand.vmem [shape: f32[8,16,32], index: 2, kind: input, shape index: {}]
  %s3 = inlined_call_operand.vmem [shape: f32[64,32], index: 3, kind: input, shape index: {}]
  %s4 = inlined_call_operand.vmem [shape: bf16[2,32,96], index: 4, kind: input, shape index: {}]
  %s5 = inlined_call_operand.vmem [shape: bf16[2,32,96], index: 5, kind: input, shape index: {}]
  %s6 = inlined_call_operand.vmem [shape: f32[2,1,96], index: 6, kind: input, shape index: {}]
  %s7 = inlined_call_operand.vmem [shape: bf16[64,128], index: 7, kind: input, shape index: {}]
  %s8 = inlined_call_operand.vmem [shape: f32[1,128], index: 8, kind: input, shape index: {}]
  %s9 = inlined_call_operand.vmem [shape: f32[8,128], index: 9, kind: output, shape index: {0}]
  %s10 = inlined_call_operand.vmem [shape: f32[2,8,32], index: 10, kind: output, shape index: {1}]
  %s11 = inlined_call_operand.vmem [shape: f32[8,16], index: 11, kind: output, shape index: {2}]
  %12 = xla_tuple %s9, %s10, %s11
  %s13 = sld [smem:[#allocation0]]
  $region66: #{_first_step_device.1} parent=0
    _
  %s15 = ssub.s32 1, %s13
  %s16 = scalar_select 0, %s15, %s13
  $region1: #{_first_step_device.1} parent=0
    #allocation2 [shape = 'u8[512]{0}', space=smem, size = 0x200, scoped, tag = 'input window, operand 0, single buffered']
    #allocation3 [shape = 's32[1]{0}', space=sflag, size = 0x4, scoped, tag = 'scoped memory for _first_step_device.1']
    %17 = vsyncpa [#allocation3], 0
    // Predicated region
    $region2: #{_first_step_device.1} parent=1 // pred_check
      _
    $region3: #{_first_step_device.1} parent=1 // pred_check_branch
      %19 = sbr.rel (0) target = $region5
    $region4: #{_first_step_device.1} parent=1 // pred_region
      %21 = vsyncadd [#allocation3], 0
      %s23 = sshll.u32 %s0, 4
      %s24 = int_to_ptr.vmem [resolvable:$true] %s23
      %26 = dma.vmem_to_smem %s24, 16, [#allocation2], [#allocation3]
    $region5: #{_first_step_device.1} parent=1 // pred_fallthru
      _
    // Predicated region
    $region6: #{_first_step_device.1} parent=1 // pred_check
      _
    $region7: #{_first_step_device.1} parent=1 // pred_check_branch
      %28 = sbr.rel (0) target = $region9
    $region8: #{_first_step_device.1} parent=1 // pred_region
      _
    $region9: #{_first_step_device.1} parent=1 // pred_fallthru
      _
    // Predicated region
    $region10: #{_first_step_device.1} parent=1 // pred_check
      _
    $region11: #{_first_step_device.1} parent=1 // pred_check_branch
      %30 = sbr.rel (0) target = $region13
    $region12: #{_first_step_device.1} parent=1 // pred_region
      _
    $region13: #{_first_step_device.1} parent=1 // pred_fallthru
      _
    // Predicated region
    $region14: #{_first_step_device.1} parent=1 // pred_check
      _
    $region15: #{_first_step_device.1} parent=1 // pred_check_branch
      %32 = sbr.rel (0) target = $region17
    $region16: #{_first_step_device.1} parent=1 // pred_region
      _
    $region17: #{_first_step_device.1} parent=1 // pred_fallthru
      _
    // Predicated region
    $region18: #{_first_step_device.1} parent=1 // pred_check
      _
    $region19: #{_first_step_device.1} parent=1 // pred_check_branch
      %34 = sbr.rel (0) target = $region21
    $region20: #{_first_step_device.1} parent=1 // pred_region
      _
    $region21: #{_first_step_device.1} parent=1 // pred_fallthru
      _
    // Predicated region
    $region22: #{_first_step_device.1} parent=1 // pred_check
      _
    $region23: #{_first_step_device.1} parent=1 // pred_check_branch
      %36 = sbr.rel (0) target = $region25
    $region24: #{_first_step_device.1} parent=1 // pred_region
      _
    $region25: #{_first_step_device.1} parent=1 // pred_fallthru
      _
    // Predicated region
    $region26: #{_first_step_device.1} parent=1 // pred_check
      _
    $region27: #{_first_step_device.1} parent=1 // pred_check_branch
      %38 = sbr.rel (0) target = $region29
    $region28: #{_first_step_device.1} parent=1 // pred_region
      _
    $region29: #{_first_step_device.1} parent=1 // pred_fallthru
      _
    // Predicated region
    $region30: #{_first_step_device.1} parent=1 // pred_check
      _
    $region31: #{_first_step_device.1} parent=1 // pred_check_branch
      %40 = sbr.rel (0) target = $region33
    $region32: #{_first_step_device.1} parent=1 // pred_region
      _
    $region33: #{_first_step_device.1} parent=1 // pred_fallthru
      _
    // Predicated region
    $region34: #{_first_step_device.1} parent=1 // pred_check
      _
    $region35: #{_first_step_device.1} parent=1 // pred_check_branch
      %42 = sbr.rel (0) target = $region37
    $region36: #{_first_step_device.1} parent=1 // pred_region
      _
    $region37: #{_first_step_device.1} parent=1 // pred_fallthru
      _
    // Predicated region
    $region38: #{_first_step_device.1} parent=1 // pred_check
      _
    $region39: #{_first_step_device.1} parent=1 // pred_check_branch
      %44 = sbr.rel (0) target = $region41
    $region40: #{_first_step_device.1} parent=1 // pred_region
      %46 = dma.done [#allocation3], 16
    $region41: #{_first_step_device.1} parent=1 // pred_fallthru
      _
    %47 = sfence
    %s49 = sld [smem:[#allocation2]]
    %s50 = scalar_lea.vmem %s3, %s49
    %v51 = vld [vmem:[%s50] sm:$0x1]
    %s52 = sld [smem:[#allocation2 + $0x1]]
    %s53 = scalar_lea.vmem %s3, %s52
    %v54 = vld [vmem:[%s53] sm:$0x1]
    %s55 = sld [smem:[#allocation2 + $0x2]]
    %s56 = scalar_lea.vmem %s3, %s55
    %v57 = vld [vmem:[%s56] sm:$0x1]
    %s58 = sld [smem:[#allocation2 + $0x3]]
    %s59 = scalar_lea.vmem %s3, %s58
    %v60 = vld [vmem:[%s59] sm:$0x1]
    %s61 = sld [smem:[#allocation2 + $0x4]]
    %s62 = scalar_lea.vmem %s3, %s61
    %v63 = vld [vmem:[%s62] sm:$0x1]
    %s64 = sld [smem:[#allocation2 + $0x5]]
    %s65 = scalar_lea.vmem %s3, %s64
    %v66 = vld [vmem:[%s65] sm:$0x1]
    %s67 = sld [smem:[#allocation2 + $0x6]]
    %s68 = scalar_lea.vmem %s3, %s67
    %v69 = vld [vmem:[%s68] sm:$0x1]
    %s70 = sld [smem:[#allocation2 + $0x7]]
    %s71 = scalar_lea.vmem %s3, %s70
    %v72 = vld [vmem:[%s71] sm:$0x1]
    %v74 = vrot.slane %v54, 7
    %v77 = vrot.slane %v57, 6
    %v80 = vrot.slane %v60, 5
    %v83 = vrot.slane %v63, 4
    %v86 = vrot.slane %v66, 3
    %v89 = vrot.slane %v69, 2
    %v92 = vrot.slane %v72, 1
    %vm94 = vcmask 1040384
    %v95 = vsel %vm94, %v51, %v74
    %vm96 = vcmask 1041408
    %v97 = vsel %vm96, %v95, %v77
    %vm98 = vcmask 1042432
    %v99 = vsel %vm98, %v97, %v80
    %vm100 = vcmask 1043456
    %v101 = vsel %vm100, %v99, %v83
    %vm102 = vcmask 1044480
    %v103 = vsel %vm102, %v101, %v86
    %vm104 = vcmask 1045504
    %v105 = vsel %vm104, %v103, %v89
    %vm106 = vcmask 1046528
    %v107 = vsel %vm106, %v105, %v92
    %v108 = vld [vmem:[%s1] sm:$0xff]
    %v109 = vpack.c.bf16 %v107, %v107
    %v110 = vld [vmem:[%s4] sm:$0xf]
    %v111 = vld [vmem:[%s4 + $0x4] sm:$0xf]
    %v112 = vld [vmem:[%s4 + $0x8] sm:$0xf]
    %v113 = vld [vmem:[%s4 + $0xc] sm:$0xf]
    %v114 = vld [vmem:[%s6] sm:$0x1]
    %v116 = vperm.slane %v114, 0
    %v122 = vunpack.c.l.b16 %v110
    %v123 = vunpack.c.l.b16 %v111
    %v124 = vunpack.c.l.b16 %v112
    %v125 = vunpack.c.l.b16 %v113
    %v126 = vpack.c.b16 %v123, %v122
    %v127 = vpack.c.b16 %v125, %v124
    %vm130 = vcmask 261120
    %v132 = vsel %vm130, %v109, 0
    %134 = vmatpush.bf16.msra.mxu0 0
    %135 = vmatpush.bf16.msra.mxu0 0
    %136 = vmatpush.bf16.msra.mxu0 0
    %137 = vmatpush.bf16.msra.mxu0 0
    %138 = vmatpush.bf16.msra.mxu0 0
    %139 = vmatpush.bf16.msra.mxu0 0
    %140 = vmatpush.bf16.msra.mxu0 %v127
    %141 = vmatpush.bf16.msra.mxu0 %v126
    %142 = vmatmul.bf16.gmra.mxu0 %v132
    %v143 = vpop.f32.mrf.mxu0
    %v144 = vadd.f32 %v116, %v143
    %v145 = vpop.f32.mrf.mxu0
    %146 = vdwg.mxu0
    %v147 = vpack.c.bf16 %v108, %v108
    %v148 = vld [vmem:[%s5] sm:$0xf]
    %v149 = vld [vmem:[%s5 + $0x4] sm:$0xf]
    %v150 = vld [vmem:[%s5 + $0x8] sm:$0xf]
    %v151 = vld [vmem:[%s5 + $0xc] sm:$0xf]
    %v156 = vunpack.c.l.b16 %v148
    %v157 = vunpack.c.l.b16 %v149
    %v158 = vunpack.c.l.b16 %v150
    %v159 = vunpack.c.l.b16 %v151
    %v160 = vpack.c.b16 %v157, %v156
    %v161 = vpack.c.b16 %v159, %v158
    %v165 = vsel %vm130, %v147, 0
    %167 = vmatpush.bf16.msra.mxu0 0
    %168 = vmatpush.bf16.msra.mxu0 0
    %169 = vmatpush.bf16.msra.mxu0 0
    %170 = vmatpush.bf16.msra.mxu0 0
    %171 = vmatpush.bf16.msra.mxu0 0
    %172 = vmatpush.bf16.msra.mxu0 0
    %173 = vmatpush.bf16.msra.mxu0 %v161
    %174 = vmatpush.bf16.msra.mxu0 %v160
    %175 = vmatmul.bf16.gmra.mxu0 %v165
    %v176 = vpop.f32.mrf.mxu0
    %v177 = vadd.f32 0.0, %v176
    %v178 = vpop.f32.mrf.mxu0
    %179 = vdwg.mxu0
    %v180 = vadd.f32 %v144, %v177
    %v181 = vxor.u32 %v180, 2147483648
    %v182 = vmul.f32 %v181, 1.442695
    %v183 = vpow.pop %v182
    %v184 = vadd.f32 %v183, 1.0
    %v185 = vrcp.pop %v184
    %v186 = vmul.f32 %v184, %v185
    %v187 = vsub.f32 1.0, %v186
    %v188 = vmul.f32 %v185, %v187
    %v189 = vadd.f32 %v185, %v188
    %vm190 = vweird.f32 %v184
    %vm191 = vweird.f32 %v185
    %vm192 = vmor %vm190, %vm191
    %v193 = vsel %vm192, %v185, %v189
    %v194 = vand.u32 2147483647, %v184
    %vm195 = vcmp.eq.f32.partialorder %v194, 8.507059e+37
    %v196 = vand.u32 %v184, 2147483648
    %v197 = vor.u32 1.1754944e-38, %v196
    %v198 = vsel %vm195, %v197, %v193
    %v199 = vmul.f32 1.0, %v198
    %201 = vrot.lane.b32.xlu0 %v177, 96
    %v202 = vpop.permute.xlu0 %201
    %v204 = vmul.f32 %v199, %v202
    %206 = vrot.lane.b32.xlu0 %v204, 32
    %v207 = vpop.permute.xlu0 %206
    %v209 = vadd.f32 %v144, %v207
    %v210 = vtanh.pop %v209
    %v211 = vsub.f32 1.0, %v199
    %213 = vrot.lane.b32.xlu0 %v210, 64
    %v214 = vpop.permute.xlu0 %213
    %v216 = vmul.f32 %v211, %v214
    %v217 = vmul.f32 %v199, %v108
    %v218 = vadd.f32 %v216, %v217
    %219 = vst.msk [vmem:[%s10] sm:$0xff] %vm130, %v218
    %s220 = scalar_lea.vmem %s1, 8
    %v221 = vld [vmem:[%s220] sm:$0xff]
    %v222 = vpack.c.bf16 %v218, %v218
    %s223 = scalar_lea.vmem %s4, 16
    %v224 = vld [vmem:[%s223] sm:$0xf]
    %v225 = vld [vmem:[%s223 + $0x4] sm:$0xf]
    %v226 = vld [vmem:[%s223 + $0x8] sm:$0xf]
    %v227 = vld [vmem:[%s223 + $0xc] sm:$0xf]
    %s228 = scalar_lea.vmem %s6, 1
    %v229 = vld [vmem:[%s228] sm:$0x1]
    %v231 = vperm.slane %v229, 0
    %v237 = vunpack.c.l.b16 %v224
    %v238 = vunpack.c.l.b16 %v225
    %v239 = vunpack.c.l.b16 %v226
    %v240 = vunpack.c.l.b16 %v227
    %v241 = vpack.c.b16 %v238, %v237
    %v242 = vpack.c.b16 %v240, %v239
    %v246 = vsel %vm130, %v222, 0
    %248 = vmatpush.bf16.msra.mxu0 0
    %249 = vmatpush.bf16.msra.mxu0 0
    %250 = vmatpush.bf16.msra.mxu0 0
    %251 = vmatpush.bf16.msra.mxu0 0
    %252 = vmatpush.bf16.msra.mxu0 0
    %253 = vmatpush.bf16.msra.mxu0 0
    %254 = vmatpush.bf16.msra.mxu0 %v242
    %255 = vmatpush.bf16.msra.mxu0 %v241
    %256 = vmatmul.bf16.gmra.mxu0 %v246
    %v257 = vpop.f32.mrf.mxu0
    %v258 = vadd.f32 %v231, %v257
    %v259 = vpop.f32.mrf.mxu0
    %260 = vdwg.mxu0
    %v261 = vpack.c.bf16 %v221, %v221
    %s262 = scalar_lea.vmem %s5, 16
    %v263 = vld [vmem:[%s262] sm:$0xf]
    %v264 = vld [vmem:[%s262 + $0x4] sm:$0xf]
    %v265 = vld [vmem:[%s262 + $0x8] sm:$0xf]
    %v266 = vld [vmem:[%s262 + $0xc] sm:$0xf]
    %v271 = vunpack.c.l.b16 %v263
    %v272 = vunpack.c.l.b16 %v264
    %v273 = vunpack.c.l.b16 %v265
    %v274 = vunpack.c.l.b16 %v266
    %v275 = vpack.c.b16 %v272, %v271
    %v276 = vpack.c.b16 %v274, %v273
    %v280 = vsel %vm130, %v261, 0
    %282 = vmatpush.bf16.msra.mxu0 0
    %283 = vmatpush.bf16.msra.mxu0 0
    %284 = vmatpush.bf16.msra.mxu0 0
    %285 = vmatpush.bf16.msra.mxu0 0
    %286 = vmatpush.bf16.msra.mxu0 0
    %287 = vmatpush.bf16.msra.mxu0 0
    %288 = vmatpush.bf16.msra.mxu0 %v276
    %289 = vmatpush.bf16.msra.mxu0 %v275
    %290 = vmatmul.bf16.gmra.mxu0 %v280
    %v291 = vpop.f32.mrf.mxu0
    %v292 = vadd.f32 0.0, %v291
    %v293 = vpop.f32.mrf.mxu0
    %294 = vdwg.mxu0
    %v295 = vadd.f32 %v258, %v292
    %v296 = vxor.u32 %v295, 2147483648
    %v297 = vmul.f32 %v296, 1.442695
    %v298 = vpow.pop %v297
    %v299 = vadd.f32 %v298, 1.0
    %v300 = vrcp.pop %v299
    %v301 = vmul.f32 %v299, %v300
    %v302 = vsub.f32 1.0, %v301
    %v303 = vmul.f32 %v300, %v302
    %v304 = vadd.f32 %v300, %v303
    %vm305 = vweird.f32 %v299
    %vm306 = vweird.f32 %v300
    %vm307 = vmor %vm305, %vm306
    %v308 = vsel %vm307, %v300, %v304
    %v309 = vand.u32 2147483647, %v299
    %vm310 = vcmp.eq.f32.partialorder %v309, 8.507059e+37
    %v311 = vand.u32 %v299, 2147483648
    %v312 = vor.u32 1.1754944e-38, %v311
    %v313 = vsel %vm310, %v312, %v308
    %v314 = vmul.f32 1.0, %v313
    %316 = vrot.lane.b32.xlu0 %v292, 96
    %v317 = vpop.permute.xlu0 %316
    %v319 = vmul.f32 %v314, %v317
    %321 = vrot.lane.b32.xlu0 %v319, 32
    %v322 = vpop.permute.xlu0 %321
    %v324 = vadd.f32 %v258, %v322
    %v325 = vtanh.pop %v324
    %v326 = vsub.f32 1.0, %v314
    %328 = vrot.lane.b32.xlu0 %v325, 64
    %v329 = vpop.permute.xlu0 %328
    %v331 = vmul.f32 %v326, %v329
    %v332 = vmul.f32 %v314, %v221
    %v333 = vadd.f32 %v331, %v332
    %s334 = scalar_lea.vmem %s10, 8
    %335 = vst.msk [vmem:[%s334] sm:$0xff] %vm130, %v333
    %v336 = vld [vmem:[%s2] sm:$0xff]
    %v337 = vld [vmem:[%s2 + $0x8] sm:$0xff]
    %v338 = vld [vmem:[%s2 + $0x10] sm:$0xff]
    %v339 = vld [vmem:[%s2 + $0x18] sm:$0xff]
    %v340 = vld [vmem:[%s2 + $0x20] sm:$0xff]
    %v341 = vld [vmem:[%s2 + $0x28] sm:$0xff]
    %v342 = vld [vmem:[%s2 + $0x30] sm:$0xff]
    %v343 = vld [vmem:[%s2 + $0x38] sm:$0xff]
    %v344 = vld [vmem:[%s2 + $0x40] sm:$0xff]
    %v345 = vld [vmem:[%s2 + $0x48] sm:$0xff]
    %v346 = vld [vmem:[%s2 + $0x50] sm:$0xff]
    %v347 = vld [vmem:[%s2 + $0x58] sm:$0xff]
    %v348 = vld [vmem:[%s2 + $0x60] sm:$0xff]
    %v349 = vld [vmem:[%s2 + $0x68] sm:$0xff]
    %v350 = vld [vmem:[%s2 + $0x70] sm:$0xff]
    %v351 = vld [vmem:[%s2 + $0x78] sm:$0xff]
    %v353 = vrot.slane %v333, 1
    %v354 = vrot.slane %v333, 2
    %v355 = vrot.slane %v333, 3
    %v356 = vrot.slane %v333, 4
    %v357 = vrot.slane %v333, 5
    %v358 = vrot.slane %v333, 6
    %v359 = vrot.slane %v333, 7
    %v360 = vsel %vm130, %v333, 0
    %v363 = vsel %vm130, %v336, 0
    %v366 = vsel %vm130, %v337, 0
    %368 = vmatpush.xpose.msra.mxu0 0.0
    %369 = vmatpush.xpose.msra.mxu0 0.0
    %370 = vmatpush.xpose.msra.mxu0 0.0
    %371 = vmatpush.xpose.msra.mxu0 0.0
    %372 = vmatpush.xpose.msra.mxu0 0.0
    %373 = vmatpush.xpose.msra.mxu0 0.0
    %374 = vmatpush.xpose.msra.mxu0 0.0
    %375 = vmatpush.xpose.msra.mxu0 0.0
    %376 = vmatpush.xpose.msra.mxu0 0.0
    %377 = vmatpush.xpose.msra.mxu0 0.0
    %378 = vmatpush.xpose.msra.mxu0 0.0
    %379 = vmatpush.xpose.msra.mxu0 0.0
    %380 = vmatpush.xpose.msra.mxu0 0.0
    %381 = vmatpush.xpose.msra.mxu0 0.0
    %382 = vmatpush.xpose.msra.mxu0 %v366
    %383 = vmatpush.xpose.msra.mxu0 %v363
    %384 = vmatmul.f32.gmra.mxu0 %v360
    %v385 = vpop.f32.mrf.mxu0
    %v386 = vadd.f32 0.0, %v385
    %387 = vdwg.mxu0
    %v388 = vsel %vm130, %v353, 0
    %v391 = vsel %vm130, %v338, 0
    %v394 = vsel %vm130, %v339, 0
    %396 = vmatpush.xpose.msra.mxu0 0.0
    %397 = vmatpush.xpose.msra.mxu0 0.0
    %398 = vmatpush.xpose.msra.mxu0 0.0
    %399 = vmatpush.xpose.msra.mxu0 0.0
    %400 = vmatpush.xpose.msra.mxu0 0.0
    %401 = vmatpush.xpose.msra.mxu0 0.0
    %402 = vmatpush.xpose.msra.mxu0 0.0
    %403 = vmatpush.xpose.msra.mxu0 0.0
    %404 = vmatpush.xpose.msra.mxu0 0.0
    %405 = vmatpush.xpose.msra.mxu0 0.0
    %406 = vmatpush.xpose.msra.mxu0 0.0
    %407 = vmatpush.xpose.msra.mxu0 0.0
    %408 = vmatpush.xpose.msra.mxu0 0.0
    %409 = vmatpush.xpose.msra.mxu0 0.0
    %410 = vmatpush.xpose.msra.mxu0 %v394
    %411 = vmatpush.xpose.msra.mxu0 %v391
    %412 = vmatmul.f32.gmra.mxu0 %v388
    %v413 = vpop.f32.mrf.mxu0
    %v414 = vadd.f32 0.0, %v413
    %415 = vdwg.mxu0
    %v416 = vsel %vm130, %v354, 0
    %v419 = vsel %vm130, %v340, 0
    %v422 = vsel %vm130, %v341, 0
    %424 = vmatpush.xpose.msra.mxu0 0.0
    %425 = vmatpush.xpose.msra.mxu0 0.0
    %426 = vmatpush.xpose.msra.mxu0 0.0
    %427 = vmatpush.xpose.msra.mxu0 0.0
    %428 = vmatpush.xpose.msra.mxu0 0.0
    %429 = vmatpush.xpose.msra.mxu0 0.0
    %430 = vmatpush.xpose.msra.mxu0 0.0
    %431 = vmatpush.xpose.msra.mxu0 0.0
    %432 = vmatpush.xpose.msra.mxu0 0.0
    %433 = vmatpush.xpose.msra.mxu0 0.0
    %434 = vmatpush.xpose.msra.mxu0 0.0
    %435 = vmatpush.xpose.msra.mxu0 0.0
    %436 = vmatpush.xpose.msra.mxu0 0.0
    %437 = vmatpush.xpose.msra.mxu0 0.0
    %438 = vmatpush.xpose.msra.mxu0 %v422
    %439 = vmatpush.xpose.msra.mxu0 %v419
    %440 = vmatmul.f32.gmra.mxu0 %v416
    %v441 = vpop.f32.mrf.mxu0
    %v442 = vadd.f32 0.0, %v441
    %443 = vdwg.mxu0
    %v444 = vsel %vm130, %v355, 0
    %v447 = vsel %vm130, %v342, 0
    %v450 = vsel %vm130, %v343, 0
    %452 = vmatpush.xpose.msra.mxu0 0.0
    %453 = vmatpush.xpose.msra.mxu0 0.0
    %454 = vmatpush.xpose.msra.mxu0 0.0
    %455 = vmatpush.xpose.msra.mxu0 0.0
    %456 = vmatpush.xpose.msra.mxu0 0.0
    %457 = vmatpush.xpose.msra.mxu0 0.0
    %458 = vmatpush.xpose.msra.mxu0 0.0
    %459 = vmatpush.xpose.msra.mxu0 0.0
    %460 = vmatpush.xpose.msra.mxu0 0.0
    %461 = vmatpush.xpose.msra.mxu0 0.0
    %462 = vmatpush.xpose.msra.mxu0 0.0
    %463 = vmatpush.xpose.msra.mxu0 0.0
    %464 = vmatpush.xpose.msra.mxu0 0.0
    %465 = vmatpush.xpose.msra.mxu0 0.0
    %466 = vmatpush.xpose.msra.mxu0 %v450
    %467 = vmatpush.xpose.msra.mxu0 %v447
    %468 = vmatmul.f32.gmra.mxu0 %v444
    %v469 = vpop.f32.mrf.mxu0
    %v470 = vadd.f32 0.0, %v469
    %471 = vdwg.mxu0
    %v472 = vsel %vm130, %v356, 0
    %v475 = vsel %vm130, %v344, 0
    %v478 = vsel %vm130, %v345, 0
    %480 = vmatpush.xpose.msra.mxu0 0.0
    %481 = vmatpush.xpose.msra.mxu0 0.0
    %482 = vmatpush.xpose.msra.mxu0 0.0
    %483 = vmatpush.xpose.msra.mxu0 0.0
    %484 = vmatpush.xpose.msra.mxu0 0.0
    %485 = vmatpush.xpose.msra.mxu0 0.0
    %486 = vmatpush.xpose.msra.mxu0 0.0
    %487 = vmatpush.xpose.msra.mxu0 0.0
    %488 = vmatpush.xpose.msra.mxu0 0.0
    %489 = vmatpush.xpose.msra.mxu0 0.0
    %490 = vmatpush.xpose.msra.mxu0 0.0
    %491 = vmatpush.xpose.msra.mxu0 0.0
    %492 = vmatpush.xpose.msra.mxu0 0.0
    %493 = vmatpush.xpose.msra.mxu0 0.0
    %494 = vmatpush.xpose.msra.mxu0 %v478
    %495 = vmatpush.xpose.msra.mxu0 %v475
    %496 = vmatmul.f32.gmra.mxu0 %v472
    %v497 = vpop.f32.mrf.mxu0
    %v498 = vadd.f32 0.0, %v497
    %499 = vdwg.mxu0
    %v500 = vsel %vm130, %v357, 0
    %v503 = vsel %vm130, %v346, 0
    %v506 = vsel %vm130, %v347, 0
    %508 = vmatpush.xpose.msra.mxu0 0.0
    %509 = vmatpush.xpose.msra.mxu0 0.0
    %510 = vmatpush.xpose.msra.mxu0 0.0
    %511 = vmatpush.xpose.msra.mxu0 0.0
    %512 = vmatpush.xpose.msra.mxu0 0.0
    %513 = vmatpush.xpose.msra.mxu0 0.0
    %514 = vmatpush.xpose.msra.mxu0 0.0
    %515 = vmatpush.xpose.msra.mxu0 0.0
    %516 = vmatpush.xpose.msra.mxu0 0.0
    %517 = vmatpush.xpose.msra.mxu0 0.0
    %518 = vmatpush.xpose.msra.mxu0 0.0
    %519 = vmatpush.xpose.msra.mxu0 0.0
    %520 = vmatpush.xpose.msra.mxu0 0.0
    %521 = vmatpush.xpose.msra.mxu0 0.0
    %522 = vmatpush.xpose.msra.mxu0 %v506
    %523 = vmatpush.xpose.msra.mxu0 %v503
    %524 = vmatmul.f32.gmra.mxu0 %v500
    %v525 = vpop.f32.mrf.mxu0
    %v526 = vadd.f32 0.0, %v525
    %527 = vdwg.mxu0
    %v528 = vsel %vm130, %v358, 0
    %v531 = vsel %vm130, %v348, 0
    %v534 = vsel %vm130, %v349, 0
    %536 = vmatpush.xpose.msra.mxu0 0.0
    %537 = vmatpush.xpose.msra.mxu0 0.0
    %538 = vmatpush.xpose.msra.mxu0 0.0
    %539 = vmatpush.xpose.msra.mxu0 0.0
    %540 = vmatpush.xpose.msra.mxu0 0.0
    %541 = vmatpush.xpose.msra.mxu0 0.0
    %542 = vmatpush.xpose.msra.mxu0 0.0
    %543 = vmatpush.xpose.msra.mxu0 0.0
    %544 = vmatpush.xpose.msra.mxu0 0.0
    %545 = vmatpush.xpose.msra.mxu0 0.0
    %546 = vmatpush.xpose.msra.mxu0 0.0
    %547 = vmatpush.xpose.msra.mxu0 0.0
    %548 = vmatpush.xpose.msra.mxu0 0.0
    %549 = vmatpush.xpose.msra.mxu0 0.0
    %550 = vmatpush.xpose.msra.mxu0 %v534
    %551 = vmatpush.xpose.msra.mxu0 %v531
    %552 = vmatmul.f32.gmra.mxu0 %v528
    %v553 = vpop.f32.mrf.mxu0
    %v554 = vadd.f32 0.0, %v553
    %555 = vdwg.mxu0
    %v556 = vsel %vm130, %v359, 0
    %v559 = vsel %vm130, %v350, 0
    %v562 = vsel %vm130, %v351, 0
    %564 = vmatpush.xpose.msra.mxu0 0.0
    %565 = vmatpush.xpose.msra.mxu0 0.0
    %566 = vmatpush.xpose.msra.mxu0 0.0
    %567 = vmatpush.xpose.msra.mxu0 0.0
    %568 = vmatpush.xpose.msra.mxu0 0.0
    %569 = vmatpush.xpose.msra.mxu0 0.0
    %570 = vmatpush.xpose.msra.mxu0 0.0
    %571 = vmatpush.xpose.msra.mxu0 0.0
    %572 = vmatpush.xpose.msra.mxu0 0.0
    %573 = vmatpush.xpose.msra.mxu0 0.0
    %574 = vmatpush.xpose.msra.mxu0 0.0
    %575 = vmatpush.xpose.msra.mxu0 0.0
    %576 = vmatpush.xpose.msra.mxu0 0.0
    %577 = vmatpush.xpose.msra.mxu0 0.0
    %578 = vmatpush.xpose.msra.mxu0 %v562
    %579 = vmatpush.xpose.msra.mxu0 %v559
    %580 = vmatmul.f32.gmra.mxu0 %v556
    %v581 = vpop.f32.mrf.mxu0
    %v582 = vadd.f32 0.0, %v581
    %583 = vdwg.mxu0
    %v592 = vrot.slane %v414, 7
    %vm593 = vcmask 1041409
    %v594 = vsel %vm593, %v592, %v386
    %v595 = vrot.slane %v442, 6
    %vm596 = vcmask 1042434
    %v597 = vsel %vm596, %v595, %v594
    %v598 = vrot.slane %v470, 5
    %vm599 = vcmask 1043459
    %v600 = vsel %vm599, %v598, %v597
    %v601 = vrot.slane %v498, 4
    %vm602 = vcmask 1044484
    %v603 = vsel %vm602, %v601, %v600
    %v604 = vrot.slane %v526, 3
    %vm605 = vcmask 1045509
    %v606 = vsel %vm605, %v604, %v603
    %v607 = vrot.slane %v554, 2
    %vm608 = vcmask 1046534
    %v609 = vsel %vm608, %v607, %v606
    %v610 = vrot.slane %v582, 1
    %vm611 = vcmask 1047559
    %v612 = vsel %vm611, %v610, %v609
    %vm614 = vcmask 130048
    %v615 = vsel %vm614, %v612, -inf
    %616 = vmax.xlane.f32.xlu0 %v615
    %v617 = vpop.xlane.xlu0 %616
    %v619 = vrot.slane %v617, 1
    %v620 = vrot.slane %v617, 2
    %v621 = vrot.slane %v617, 3
    %v622 = vrot.slane %v617, 4
    %v623 = vrot.slane %v617, 5
    %v624 = vrot.slane %v617, 6
    %v625 = vrot.slane %v617, 7
    %v634 = vsub.f32 %v386, %v617
    %v635 = vsub.f32 %v414, %v619
    %v636 = vsub.f32 %v442, %v620
    %v637 = vsub.f32 %v470, %v621
    %v638 = vsub.f32 %v498, %v622
    %v639 = vsub.f32 %v526, %v623
    %v640 = vsub.f32 %v554, %v624
    %v641 = vsub.f32 %v582, %v625
    %v642 = vmul.f32 %v634, 1.442695
    %v643 = vpow.pop %v642
    %v644 = vmul.f32 %v635, 1.442695
    %v645 = vpow.pop %v644
    %v646 = vmul.f32 %v636, 1.442695
    %v647 = vpow.pop %v646
    %v648 = vmul.f32 %v637, 1.442695
    %v649 = vpow.pop %v648
    %v650 = vmul.f32 %v638, 1.442695
    %v651 = vpow.pop %v650
    %v652 = vmul.f32 %v639, 1.442695
    %v653 = vpow.pop %v652
    %v654 = vmul.f32 %v640, 1.442695
    %v655 = vpow.pop %v654
    %v656 = vmul.f32 %v641, 1.442695
    %v657 = vpow.pop %v656
    %v666 = vrot.slane %v645, 7
    %v667 = vsel %vm593, %v666, %v643
    %v668 = vrot.slane %v647, 6
    %v669 = vsel %vm596, %v668, %v667
    %v670 = vrot.slane %v649, 5
    %v671 = vsel %vm599, %v670, %v669
    %v672 = vrot.slane %v651, 4
    %v673 = vsel %vm602, %v672, %v671
    %v674 = vrot.slane %v653, 3
    %v675 = vsel %vm605, %v674, %v673
    %v676 = vrot.slane %v655, 2
    %v677 = vsel %vm608, %v676, %v675
    %v678 = vrot.slane %v657, 1
    %v679 = vsel %vm611, %v678, %v677
    %v681 = vsel %vm614, %v679, 0.0
    %682 = vadd.xlane.f32.xlu0 %v681
    %v683 = vpop.xlane.xlu0 %682
    %v684 = vrcp.pop %v683
    %v686 = vrot.slane %v684, 1
    %v687 = vrot.slane %v684, 2
    %v688 = vrot.slane %v684, 3
    %v689 = vrot.slane %v684, 4
    %v690 = vrot.slane %v684, 5
    %v691 = vrot.slane %v684, 6
    %v692 = vrot.slane %v684, 7
    %v701 = vmul.f32 %v643, %v684
    %v702 = vmul.f32 %v645, %v686
    %v703 = vmul.f32 %v647, %v687
    %v704 = vmul.f32 %v649, %v688
    %v705 = vmul.f32 %v651, %v689
    %v706 = vmul.f32 %v653, %v690
    %v707 = vmul.f32 %v655, %v691
    %v708 = vmul.f32 %v657, %v692
    %v710 = vsel %vm614, %v701, 0
    %712 = vmatpush.msra.mxu0 0.0
    %713 = vmatpush.msra.mxu0 0.0
    %714 = vmatpush.msra.mxu0 0.0
    %715 = vmatpush.msra.mxu0 0.0
    %716 = vmatpush.msra.mxu0 0.0
    %717 = vmatpush.msra.mxu0 0.0
    %718 = vmatpush.msra.mxu0 0.0
    %719 = vmatpush.msra.mxu0 0.0
    %720 = vmatpush.msra.mxu0 0.0
    %721 = vmatpush.msra.mxu0 0.0
    %722 = vmatpush.msra.mxu0 0.0
    %723 = vmatpush.msra.mxu0 0.0
    %724 = vmatpush.msra.mxu0 0.0
    %725 = vmatpush.msra.mxu0 0.0
    %726 = vmatpush.msra.mxu0 %v337
    %727 = vmatpush.msra.mxu0 %v336
    %728 = vmatmul.f32.gmra.mxu0 %v710
    %v729 = vpop.f32.mrf.mxu0
    %v730 = vadd.f32 0.0, %v729
    %731 = vdwg.mxu0
    %v733 = vsel %vm614, %v702, 0
    %735 = vmatpush.msra.mxu0 0.0
    %736 = vmatpush.msra.mxu0 0.0
    %737 = vmatpush.msra.mxu0 0.0
    %738 = vmatpush.msra.mxu0 0.0
    %739 = vmatpush.msra.mxu0 0.0
    %740 = vmatpush.msra.mxu0 0.0
    %741 = vmatpush.msra.mxu0 0.0
    %742 = vmatpush.msra.mxu0 0.0
    %743 = vmatpush.msra.mxu0 0.0
    %744 = vmatpush.msra.mxu0 0.0
    %745 = vmatpush.msra.mxu0 0.0
    %746 = vmatpush.msra.mxu0 0.0
    %747 = vmatpush.msra.mxu0 0.0
    %748 = vmatpush.msra.mxu0 0.0
    %749 = vmatpush.msra.mxu0 %v339
    %750 = vmatpush.msra.mxu0 %v338
    %751 = vmatmul.f32.gmra.mxu0 %v733
    %v752 = vpop.f32.mrf.mxu0
    %v753 = vadd.f32 0.0, %v752
    %754 = vdwg.mxu0
    %v756 = vsel %vm614, %v703, 0
    %758 = vmatpush.msra.mxu0 0.0
    %759 = vmatpush.msra.mxu0 0.0
    %760 = vmatpush.msra.mxu0 0.0
    %761 = vmatpush.msra.mxu0 0.0
    %762 = vmatpush.msra.mxu0 0.0
    %763 = vmatpush.msra.mxu0 0.0
    %764 = vmatpush.msra.mxu0 0.0
    %765 = vmatpush.msra.mxu0 0.0
    %766 = vmatpush.msra.mxu0 0.0
    %767 = vmatpush.msra.mxu0 0.0
    %768 = vmatpush.msra.mxu0 0.0
    %769 = vmatpush.msra.mxu0 0.0
    %770 = vmatpush.msra.mxu0 0.0
    %771 = vmatpush.msra.mxu0 0.0
    %772 = vmatpush.msra.mxu0 %v341
    %773 = vmatpush.msra.mxu0 %v340
    %774 = vmatmul.f32.gmra.mxu0 %v756
    %v775 = vpop.f32.mrf.mxu0
    %v776 = vadd.f32 0.0, %v775
    %777 = vdwg.mxu0
    %v779 = vsel %vm614, %v704, 0
    %781 = vmatpush.msra.mxu0 0.0
    %782 = vmatpush.msra.mxu0 0.0
    %783 = vmatpush.msra.mxu0 0.0
    %784 = vmatpush.msra.mxu0 0.0
    %785 = vmatpush.msra.mxu0 0.0
    %786 = vmatpush.msra.mxu0 0.0
    %787 = vmatpush.msra.mxu0 0.0
    %788 = vmatpush.msra.mxu0 0.0
    %789 = vmatpush.msra.mxu0 0.0
    %790 = vmatpush.msra.mxu0 0.0
    %791 = vmatpush.msra.mxu0 0.0
    %792 = vmatpush.msra.mxu0 0.0
    %793 = vmatpush.msra.mxu0 0.0
    %794 = vmatpush.msra.mxu0 0.0
    %795 = vmatpush.msra.mxu0 %v343
    %796 = vmatpush.msra.mxu0 %v342
    %797 = vmatmul.f32.gmra.mxu0 %v779
    %v798 = vpop.f32.mrf.mxu0
    %v799 = vadd.f32 0.0, %v798
    %800 = vdwg.mxu0
    %v802 = vsel %vm614, %v705, 0
    %804 = vmatpush.msra.mxu0 0.0
    %805 = vmatpush.msra.mxu0 0.0
    %806 = vmatpush.msra.mxu0 0.0
    %807 = vmatpush.msra.mxu0 0.0
    %808 = vmatpush.msra.mxu0 0.0
    %809 = vmatpush.msra.mxu0 0.0
    %810 = vmatpush.msra.mxu0 0.0
    %811 = vmatpush.msra.mxu0 0.0
    %812 = vmatpush.msra.mxu0 0.0
    %813 = vmatpush.msra.mxu0 0.0
    %814 = vmatpush.msra.mxu0 0.0
    %815 = vmatpush.msra.mxu0 0.0
    %816 = vmatpush.msra.mxu0 0.0
    %817 = vmatpush.msra.mxu0 0.0
    %818 = vmatpush.msra.mxu0 %v345
    %819 = vmatpush.msra.mxu0 %v344
    %820 = vmatmul.f32.gmra.mxu0 %v802
    %v821 = vpop.f32.mrf.mxu0
    %v822 = vadd.f32 0.0, %v821
    %823 = vdwg.mxu0
    %v825 = vsel %vm614, %v706, 0
    %827 = vmatpush.msra.mxu0 0.0
    %828 = vmatpush.msra.mxu0 0.0
    %829 = vmatpush.msra.mxu0 0.0
    %830 = vmatpush.msra.mxu0 0.0
    %831 = vmatpush.msra.mxu0 0.0
    %832 = vmatpush.msra.mxu0 0.0
    %833 = vmatpush.msra.mxu0 0.0
    %834 = vmatpush.msra.mxu0 0.0
    %835 = vmatpush.msra.mxu0 0.0
    %836 = vmatpush.msra.mxu0 0.0
    %837 = vmatpush.msra.mxu0 0.0
    %838 = vmatpush.msra.mxu0 0.0
    %839 = vmatpush.msra.mxu0 0.0
    %840 = vmatpush.msra.mxu0 0.0
    %841 = vmatpush.msra.mxu0 %v347
    %842 = vmatpush.msra.mxu0 %v346
    %843 = vmatmul.f32.gmra.mxu0 %v825
    %v844 = vpop.f32.mrf.mxu0
    %v845 = vadd.f32 0.0, %v844
    %846 = vdwg.mxu0
    %v848 = vsel %vm614, %v707, 0
    %850 = vmatpush.msra.mxu0 0.0
    %851 = vmatpush.msra.mxu0 0.0
    %852 = vmatpush.msra.mxu0 0.0
    %853 = vmatpush.msra.mxu0 0.0
    %854 = vmatpush.msra.mxu0 0.0
    %855 = vmatpush.msra.mxu0 0.0
    %856 = vmatpush.msra.mxu0 0.0
    %857 = vmatpush.msra.mxu0 0.0
    %858 = vmatpush.msra.mxu0 0.0
    %859 = vmatpush.msra.mxu0 0.0
    %860 = vmatpush.msra.mxu0 0.0
    %861 = vmatpush.msra.mxu0 0.0
    %862 = vmatpush.msra.mxu0 0.0
    %863 = vmatpush.msra.mxu0 0.0
    %864 = vmatpush.msra.mxu0 %v349
    %865 = vmatpush.msra.mxu0 %v348
    %866 = vmatmul.f32.gmra.mxu0 %v848
    %v867 = vpop.f32.mrf.mxu0
    %v868 = vadd.f32 0.0, %v867
    %869 = vdwg.mxu0
    %v871 = vsel %vm614, %v708, 0
    %873 = vmatpush.msra.mxu0 0.0
    %874 = vmatpush.msra.mxu0 0.0
    %875 = vmatpush.msra.mxu0 0.0
    %876 = vmatpush.msra.mxu0 0.0
    %877 = vmatpush.msra.mxu0 0.0
    %878 = vmatpush.msra.mxu0 0.0
    %879 = vmatpush.msra.mxu0 0.0
    %880 = vmatpush.msra.mxu0 0.0
    %881 = vmatpush.msra.mxu0 0.0
    %882 = vmatpush.msra.mxu0 0.0
    %883 = vmatpush.msra.mxu0 0.0
    %884 = vmatpush.msra.mxu0 0.0
    %885 = vmatpush.msra.mxu0 0.0
    %886 = vmatpush.msra.mxu0 0.0
    %887 = vmatpush.msra.mxu0 %v351
    %888 = vmatpush.msra.mxu0 %v350
    %889 = vmatmul.f32.gmra.mxu0 %v871
    %v890 = vpop.f32.mrf.mxu0
    %v891 = vadd.f32 0.0, %v890
    %892 = vdwg.mxu0
    %v901 = vrot.slane %v753, 7
    %v902 = vsel %vm593, %v901, %v730
    %v903 = vrot.slane %v776, 6
    %v904 = vsel %vm596, %v903, %v902
    %v905 = vrot.slane %v799, 5
    %v906 = vsel %vm599, %v905, %v904
    %v907 = vrot.slane %v822, 4
    %v908 = vsel %vm602, %v907, %v906
    %v909 = vrot.slane %v845, 3
    %v910 = vsel %vm605, %v909, %v908
    %v911 = vrot.slane %v868, 2
    %v912 = vsel %vm608, %v911, %v910
    %v913 = vrot.slane %v891, 1
    %v914 = vsel %vm611, %v913, %v912
    %915 = vrot.lane.b32.xlu0 %v914, 32
    %v916 = vpop.permute.xlu0 %915
    %v918 = vsel %vm130, %v333, %v916
    %v919 = vpack.c.bf16 %v918, %v918
    %v920 = vld [vmem:[%s7] sm:$0xf]
    %v921 = vld [vmem:[%s7 + $0x4] sm:$0xf]
    %v922 = vld [vmem:[%s7 + $0x8] sm:$0xf]
    %v923 = vld [vmem:[%s7 + $0xc] sm:$0xf]
    %v924 = vld [vmem:[%s7 + $0x10] sm:$0xf]
    %v925 = vld [vmem:[%s7 + $0x14] sm:$0xf]
    %v926 = vld [vmem:[%s7 + $0x18] sm:$0xf]
    %v927 = vld [vmem:[%s7 + $0x1c] sm:$0xf]
    %v928 = vld [vmem:[%s8] sm:$0x1]
    %v930 = vperm.slane %v928, 0
    %v940 = vunpack.c.l.b16 %v920
    %v941 = vunpack.c.l.b16 %v921
    %v942 = vunpack.c.l.b16 %v922
    %v943 = vunpack.c.l.b16 %v923
    %v944 = vunpack.c.l.b16 %v924
    %v945 = vunpack.c.l.b16 %v925
    %v946 = vunpack.c.l.b16 %v926
    %v947 = vunpack.c.l.b16 %v927
    %v948 = vpack.c.b16 %v941, %v940
    %v949 = vpack.c.b16 %v943, %v942
    %v950 = vpack.c.b16 %v945, %v944
    %v951 = vpack.c.b16 %v947, %v946
    %vm956 = vcmask 523264
    %v958 = vsel %vm956, %v919, 0
    %960 = vmatpush.bf16.msra.mxu0 0
    %961 = vmatpush.bf16.msra.mxu0 0
    %962 = vmatpush.bf16.msra.mxu0 0
    %963 = vmatpush.bf16.msra.mxu0 0
    %964 = vmatpush.bf16.msra.mxu0 %v951
    %965 = vmatpush.bf16.msra.mxu0 %v950
    %966 = vmatpush.bf16.msra.mxu0 %v949
    %967 = vmatpush.bf16.msra.mxu0 %v948
    %968 = vmatmul.bf16.gmra.mxu0 %v958
    %v969 = vpop.f32.mrf.mxu0
    %v970 = vadd.f32 %v930, %v969
    %v971 = vpop.f32.mrf.mxu0
    %972 = vdwg.mxu0
    %973 = vmax.xlane.f32.xlu0 %v970
    %v974 = vpop.xlane.xlu0 %973
    %v975 = vsub.f32 %v970, %v974
    %v976 = vmul.f32 %v975, 1.442695
    %v977 = vpow.pop %v976
    %978 = vadd.xlane.f32.xlu0 %v977
    %v979 = vpop.xlane.xlu0 %978
    %v980 = vlog2.pop %v979
    %v981 = vmul.f32 %v980, 0.6931472
    %v982 = vadd.f32 %v981, %v974
    %v983 = vsub.f32 %v970, %v982
    %984 = vst [vmem:[%s9] sm:$0xff] %v983
    %v985 = vrot.slane %v702, 7
    %v986 = vsel %vm593, %v985, %v701
    %v987 = vrot.slane %v703, 6
    %v988 = vsel %vm596, %v987, %v986
    %v989 = vrot.slane %v704, 5
    %v990 = vsel %vm599, %v989, %v988
    %v991 = vrot.slane %v705, 4
    %v992 = vsel %vm602, %v991, %v990
    %v993 = vrot.slane %v706, 3
    %v994 = vsel %vm605, %v993, %v992
    %v995 = vrot.slane %v707, 2
    %v996 = vsel %vm608, %v995, %v994
    %v997 = vrot.slane %v708, 1
    %v998 = vsel %vm611, %v997, %v996
    %1000 = vst.msk [vmem:[%s11] sm:$0xff] %vm614, %v998
    // Predicated region
    $region42: #{_first_step_device.1} parent=1 // pred_check
      _
    $region43: #{_first_step_device.1} parent=1 // pred_check_branch
      %1002 = sbr.rel (0) target = $region45
    $region44: #{_first_step_device.1} parent=1 // pred_region
      _
    $region45: #{_first_step_device.1} parent=1 // pred_fallthru
      _
    // Predicated region
    $region46: #{_first_step_device.1} parent=1 // pred_check
      _
    $region47: #{_first_step_device.1} parent=1 // pred_check_branch
      %1004 = sbr.rel (0) target = $region49
    $region48: #{_first_step_device.1} parent=1 // pred_region
      _
    $region49: #{_first_step_device.1} parent=1 // pred_fallthru
      _
    // Predicated region
    $region50: #{_first_step_device.1} parent=1 // pred_check
      _
    $region51: #{_first_step_device.1} parent=1 // pred_check_branch
      %1006 = sbr.rel (0) target = $region53
    $region52: #{_first_step_device.1} parent=1 // pred_region
      _
    $region53: #{_first_step_device.1} parent=1 // pred_fallthru
      _
    // Predicated region
    $region54: #{_first_step_device.1} parent=1 // pred_check
      _
    $region55: #{_first_step_device.1} parent=1 // pred_check_branch
      %1008 = sbr.rel (0) target = $region57
    $region56: #{_first_step_device.1} parent=1 // pred_region
      _
    $region57: #{_first_step_device.1} parent=1 // pred_fallthru
      _
    // Predicated region
    $region58: #{_first_step_device.1} parent=1 // pred_check
      _
    $region59: #{_first_step_device.1} parent=1 // pred_check_branch
      %1010 = sbr.rel (0) target = $region61
    $region60: #{_first_step_device.1} parent=1 // pred_region
      _
    $region61: #{_first_step_device.1} parent=1 // pred_fallthru
      _
    // Predicated region
    $region62: #{_first_step_device.1} parent=1 // pred_check
      _
    $region63: #{_first_step_device.1} parent=1 // pred_check_branch
      %1012 = sbr.rel (0) target = $region65
    $region64: #{_first_step_device.1} parent=1 // pred_region
      _
    $region65: #{_first_step_device.1} parent=1 // pred_fallthru
      _
    %1013 = vsyncpa [#allocation3], 1

</llo_original>
